<compile_context>
chip_gen: v6e
topology: v6e:2x2x1
jax: 0.10.0
libtpu: 0.0.40
codegen_flags: <defaults>
</compile_context>

<pallas_src>
import functools

import jax
import jax.numpy as jnp
from jax import lax
from jax.experimental import pallas as pl
from jax.experimental.pallas import tpu as pltpu


# ----------------------------- config (mirrors the PyTorch config dict) -----
CONFIG = {
    "scoring_function": {
        "activation": {"name": "LeakyReLU", "params": {"negative_slope": 0.01}},
        "final_activation": {"name": "Softplus", "params": {"beta": 1.0, "threshold": 20.0}},
        "dropout": 0.1,          # identity in eval mode
        "l2_lambda": 1e-3,
    }
}
BN_EPS = 1e-5


def _leaky_relu(x, negative_slope):
    # max-form is exact for 0 < negative_slope < 1 and cheaper on the VPU.
    return jnp.maximum(x, negative_slope * x)


def _softplus_safe(x, beta, threshold):
    # PyTorch Softplus: (1/beta)*log(1+exp(beta*x)); linear above threshold.
    # exp argument clamped so the masked branch can never produce inf/NaN.
    z = beta * x
    y = jnp.log1p(jnp.exp(jnp.minimum(z, threshold))) / beta
    return jnp.where(z > threshold, x, y)


# ----------------------------- kernel ---------------------------------------
def scoring_kernel(
    x_ref,                       # (1, BT)   batch tile, lane-dense
    w1_ref, b1_ref,              # (64, 1)   folded Linear(1,64)+BN(64)
    w2_ref, b2_ref,              # (32, 64), (32, 1) folded Linear(64,32)+BN(32)
    w3t_ref, b3_ref,             # (1, 32), (1, 1)   final Linear(32,1), weight transposed
    out_ref,                     # (1, BT)
    *, negative_slope, sp_beta, sp_threshold,
):
    x = x_ref[...]                                              # (1, BT)

    # ---- layer 1: K=1 "matmul" as a VPU broadcast FMA (BN folded) ----
    h = w1_ref[...] * x + b1_ref[...]                           # (64, BT)
    h = _leaky_relu(h, negative_slope)

    # ---- layer 2: (32,64) @ (64,BT) on the MXU, lane-dense result ----
    h = jnp.dot(w2_ref[...], h, preferred_element_type=jnp.float32) + b2_ref[...]
    h = _leaky_relu(h, negative_slope)                          # (32, BT)
    # Dropout is identity in eval mode.

    # ---- layer 3: (1,32) @ (32,BT) on the MXU (keeps VPU/XLU free) ----
    s = jnp.dot(w3t_ref[...], h, preferred_element_type=jnp.float32) + b3_ref[...]
    s = _softplus_safe(s, sp_beta, sp_threshold)                # (1, BT)
    out_ref[...] = jnp.clip(s, 0.01, 1.0)


# ----------------------------- parameters -----------------------------------
def init_params(key, input_dim=1, hidden_dims=(64, 32), output_dim=1):
    """Raw parameters mirroring the PyTorch __init__ (stored (in, out))."""
    k2, k3 = jax.random.split(key, 2)
    h0, h1 = hidden_dims

    # First layer: constant init (weight=-1, bias=1)
    w1 = jnp.full((input_dim, h0), -1.0, jnp.float32)
    b1 = jnp.full((1, h0), 1.0, jnp.float32)
    g1, be1 = jnp.ones((1, h0), jnp.float32), jnp.zeros((1, h0), jnp.float32)
    rm1, rv1 = jnp.zeros((1, h0), jnp.float32), jnp.ones((1, h0), jnp.float32)

    # Second Linear: init_weights -> N(0, 0.01), bias 0.5
    w2 = (0.01 * jax.random.normal(k2, (h0, h1))).astype(jnp.float32)
    b2 = jnp.full((1, h1), 0.5, jnp.float32)
    g2, be2 = jnp.ones((1, h1), jnp.float32), jnp.zeros((1, h1), jnp.float32)
    rm2, rv2 = jnp.zeros((1, h1), jnp.float32), jnp.ones((1, h1), jnp.float32)

    # Final Linear: init_weights re-inits it -> N(0, 0.01), bias 0.5
    w3 = (0.01 * jax.random.normal(k3, (h1, output_dim))).astype(jnp.float32)
    b3 = jnp.full((1, output_dim), 0.5, jnp.float32)

    return (w1, b1, g1, be1, rm1, rv1,
            w2, b2, g2, be2, rm2, rv2,
            w3, b3)


def fold_params(params):
    """Fold eval-mode BatchNorms into the Linear weights and transpose to the
    (out_features, in_features) layout used by the kernel. Called ONCE at
    parameter-load time, not per forward call."""
    (w1, b1, g1, be1, rm1, rv1,
     w2, b2, g2, be2, rm2, rv2,
     w3, b3) = params

    s1 = g1 * lax.rsqrt(rv1 + BN_EPS)                  # (1, 64)
    w1f = w1 * s1                                      # (1, 64)
    b1f = (b1 - rm1) * s1 + be1                        # (1, 64)

    s2 = g2 * lax.rsqrt(rv2 + BN_EPS)                  # (1, 32)
    w2f = w2 * s2                                      # (64, 32)
    b2f = (b2 - rm2) * s2 + be2                        # (1, 32)

    return (
        jnp.asarray(w1f.T, jnp.float32),               # (64, 1)
        jnp.asarray(b1f.T, jnp.float32),               # (64, 1)
        jnp.asarray(w2f.T, jnp.float32),               # (32, 64)
        jnp.asarray(b2f.T, jnp.float32),               # (32, 1)
        jnp.asarray(w3.T, jnp.float32),                # (1, 32)  pre-transposed for MXU
        jnp.asarray(b3, jnp.float32),                  # (1, 1)
    )


# ----------------------------- tiling helpers --------------------------------
def _round_up(n, m):
    return ((n + m - 1) // m) * m


def _choose_tile(batch, block_batch):
    """Pick a lane-dense batch tile.  Large tiles amortize the ~0.35 us/step
    pipeline overhead; keep >= 2 grid steps when possible so v7x can shard the
    parallel axis across its two TensorCores."""
    b128 = _round_up(max(batch, 1), 128)
    if b128 <= 128:
        return b128, b128
    n_tiles = max(2, pl.cdiv(b128, block_batch))
    bt = _round_up(pl.cdiv(b128, n_tiles), 128)
    b_pad = _round_up(b128, bt)
    return bt, b_pad


# ----------------------------- forward (jitted) ------------------------------
@functools.partial(
    jax.jit,
    static_argnames=("negative_slope", "sp_beta", "sp_threshold", "block_batch"),
)
def _scoring_forward(x, folded, *, negative_slope, sp_beta, sp_threshold, block_batch):
    assert x.ndim == 2 and x.shape[1] == 1, "kernel assumes input_dim == 1"
    B = x.shape[0]
    BT, B_pad = _choose_tile(B, block_batch)

    # Lane-dense layout: batch on the last axis; pad lanes with zeros
    # (reshape + pad, no full-size zero-fill + scatter).
    x_row = x.reshape(1, B).astype(jnp.float32)
    x_t = jnp.pad(x_row, ((0, 0), (0, B_pad - B)))

    kernel = functools.partial(
        scoring_kernel,
        negative_slope=negative_slope, sp_beta=sp_beta, sp_threshold=sp_threshold,
    )

    # x / out tiled along batch; folded params resident via constant index_map.
    param_specs = [pl.BlockSpec(p.shape, lambda i: (0, 0)) for p in folded]
    grid_spec = pltpu.PrefetchScalarGridSpec(
        num_scalar_prefetch=0,
        grid=(B_pad // BT,),
        in_specs=[pl.BlockSpec((1, BT), lambda i: (0, i))] + param_specs,
        out_specs=pl.BlockSpec((1, BT), lambda i: (0, i)),
    )

    out_t = pl.pallas_call(
        kernel,
        out_shape=jax.ShapeDtypeStruct((1, B_pad), jnp.float32),
        grid_spec=grid_spec,
        compiler_params=pltpu.CompilerParams(
            dimension_semantics=("parallel",),
            # 48 MiB: above v5e's 16 MiB scoped default, below v7x's 64 MiB physical.
            vmem_limit_bytes=48 * 1024 * 1024,
        ),
    )(x_t, *folded)

    return out_t[0, :B].reshape(B, 1)


def make_scoring_fn(params, config=CONFIG, block_batch=16384):
    """Fold BN/biases once, compute the (constant) L2 term once, and return a
    jitted eval-mode forward fn plus the side quantities the PyTorch module
    stashes as attributes."""
    sf = config["scoring_function"]
    ns = float(sf["activation"]["params"]["negative_slope"])
    sp_beta = float(sf["final_activation"]["params"]["beta"])
    sp_thr = float(sf["final_activation"]["params"]["threshold"])

    folded = fold_params(params)

    # L2 over trainable parameters only (Linear W/b, BN gamma/beta); BatchNorm
    # running_mean/running_var are buffers in PyTorch and are excluded.
    (w1, b1, g1, be1, _rm1, _rv1,
     w2, b2, g2, be2, _rm2, _rv2,
     w3, b3) = params
    l2_reg = sf["l2_lambda"] * sum(
        jnp.sum(p ** 2) for p in (w1, b1, g1, be1, w2, b2, g2, be2, w3, b3))

    aux = {"l2_reg": l2_reg, "stability_loss": 0.0, "separation_loss": 0.0}
    # TODO(synk): training-mode branch (dropout mask, input perturbation,
    # batch-statistic BatchNorm, stability loss) not implemented.

    def forward(x):
        return _scoring_forward(
            x, folded,
            negative_slope=ns, sp_beta=sp_beta, sp_threshold=sp_thr,
            block_batch=block_batch,
        )

    return forward, aux


def scoring_function(x, params, config=CONFIG, block_batch=16384):
    """Convenience one-shot API (folds per call). Prefer make_scoring_fn."""
    fwd, aux = make_scoring_fn(params, config=config, block_batch=block_batch)
    return fwd(x), (aux["l2_reg"], aux["stability_loss"], aux["separation_loss"])


# ----------------------------- pure-JAX reference ----------------------------
def _batchnorm_eval(x, gamma, beta, running_mean, running_var):
    inv = lax.rsqrt(running_var + BN_EPS)
    return (x - running_mean) * inv * gamma + beta


def _reference(x, params, config=CONFIG):
    (w1, b1, g1, be1, rm1, rv1, w2, b2, g2, be2, rm2, rv2, w3, b3) = params
    sf = config["scoring_function"]
    ns = sf["activation"]["params"]["negative_slope"]
    beta = sf["final_activation"]["params"]["beta"]
    thr = sf["final_activation"]["params"]["threshold"]
    h = _batchnorm_eval(x @ w1 + b1, g1, be1, rm1, rv1)
    h = _leaky_relu(h, ns)
    h = _batchnorm_eval(h @ w2 + b2, g2, be2, rm2, rv2)
    h = _leaky_relu(h, ns)
    s = _softplus_safe(h @ w3 + b3, beta, thr)
    return jnp.clip(s, 0.01, 1.0)


if __name__ == "__main__":
    key = jax.random.PRNGKey(0)
    k_param, k_x = jax.random.split(key)

    B, IN_DIM = 8, 1
    params = init_params(k_param, input_dim=IN_DIM, hidden_dims=(64, 32), output_dim=1)
    x = jax.random.normal(k_x, (B, IN_DIM), dtype=jnp.float32)

    fwd, aux = make_scoring_fn(params)

    scores = jax.block_until_ready(fwd(x))
    ref = _reference(x, params)
    assert scores.shape == (B, 1)
    assert jnp.allclose(scores, ref, atol=1e-5, rtol=1e-5), (scores, ref)

    # Exercise the multi-tile (>=2 grid steps) + padded-lane path.
    B2 = 300
    x2 = jax.random.normal(jax.random.PRNGKey(1), (B2, IN_DIM), dtype=jnp.float32)
    scores2 = jax.block_until_ready(fwd(x2))
    ref2 = _reference(x2, params)
    assert scores2.shape == (B2, 1)
    assert jnp.allclose(scores2, ref2, atol=1e-5, rtol=1e-5), (scores2, ref2)

    print("KERNEL_OK")
</pallas_src>

<mosaic_0001>
module attributes {stable_mosaic.version = 11 : i64} {
  func.func @scoring_kernel(%arg0: i32, %arg1: memref<1x128xf32, #tpu.memory_space<vmem>>, %arg2: memref<64x1xf32, #tpu.memory_space<vmem>>, %arg3: memref<64x1xf32, #tpu.memory_space<vmem>>, %arg4: memref<32x64xf32, #tpu.memory_space<vmem>>, %arg5: memref<32x1xf32, #tpu.memory_space<vmem>>, %arg6: memref<1x32xf32, #tpu.memory_space<vmem>>, %arg7: memref<1x1xf32, #tpu.memory_space<vmem>>, %arg8: memref<1x128xf32, #tpu.memory_space<vmem>>) attributes {dimension_semantics = [#tpu.dimension_semantics<parallel>], iteration_bounds = array<i64: 1>, scalar_prefetch = 0 : i64, scratch_operands = 0 : i64, tpu.core_type = #tpu.core_type<tc>, window_params = [{transform_indices = @transform_0, window_bounds = array<i64: 1, 128>}, {pipeline_mode = #tpu.pipeline_mode<synchronous>, transform_indices = @transform_1, window_bounds = array<i64: 64, 1>}, {pipeline_mode = #tpu.pipeline_mode<synchronous>, transform_indices = @transform_2, window_bounds = array<i64: 64, 1>}, {pipeline_mode = #tpu.pipeline_mode<synchronous>, transform_indices = @transform_3, window_bounds = array<i64: 32, 64>}, {pipeline_mode = #tpu.pipeline_mode<synchronous>, transform_indices = @transform_4, window_bounds = array<i64: 32, 1>}, {pipeline_mode = #tpu.pipeline_mode<synchronous>, transform_indices = @transform_5, window_bounds = array<i64: 1, 32>}, {pipeline_mode = #tpu.pipeline_mode<synchronous>, transform_indices = @transform_6, window_bounds = array<i64: 1, 1>}, {transform_indices = @transform_7, window_bounds = array<i64: 1, 128>}]} {
    %c0 = arith.constant 0 : index
    %c0_0 = arith.constant 0 : index
    %0 = vector.load %arg1[%c0, %c0_0] : memref<1x128xf32, #tpu.memory_space<vmem>>, vector<1x128xf32>
    %c0_1 = arith.constant 0 : index
    %c0_2 = arith.constant 0 : index
    %1 = vector.load %arg2[%c0_1, %c0_2] : memref<64x1xf32, #tpu.memory_space<vmem>>, vector<64x1xf32>
    %2 = vector.broadcast %1 : vector<64x1xf32> to vector<64x128xf32>
    %3 = vector.broadcast %0 : vector<1x128xf32> to vector<64x128xf32>
    %4 = arith.mulf %2, %3 : vector<64x128xf32>
    %c0_3 = arith.constant 0 : index
    %c0_4 = arith.constant 0 : index
    %5 = vector.load %arg3[%c0_3, %c0_4] : memref<64x1xf32, #tpu.memory_space<vmem>>, vector<64x1xf32>
    %6 = vector.broadcast %5 : vector<64x1xf32> to vector<64x128xf32>
    %7 = arith.addf %4, %6 : vector<64x128xf32>
    %cst = arith.constant 0.00999999977 : f32
    %8 = vector.broadcast %cst : f32 to vector<64x128xf32>
    %9 = arith.mulf %8, %7 : vector<64x128xf32>
    %10 = arith.maximumf %7, %9 : vector<64x128xf32>
    %c0_5 = arith.constant 0 : index
    %c0_6 = arith.constant 0 : index
    %11 = vector.load %arg4[%c0_5, %c0_6] : memref<32x64xf32, #tpu.memory_space<vmem>>, vector<32x64xf32>
    %cst_7 = arith.constant dense<0.000000e+00> : vector<32x128xf32>
    %12 = tpu.matmul %11, %10, %cst_7 {dimension_numbers = #tpu.dot_dimension_numbers<[1], [0], [0], [1], [0, 0, 1, 1], [], []>} : vector<32x64xf32>, vector<64x128xf32>, vector<32x128xf32> -> vector<32x128xf32>
    %c0_8 = arith.constant 0 : index
    %c0_9 = arith.constant 0 : index
    %13 = vector.load %arg5[%c0_8, %c0_9] : memref<32x1xf32, #tpu.memory_space<vmem>>, vector<32x1xf32>
    %14 = vector.broadcast %13 : vector<32x1xf32> to vector<32x128xf32>
    %15 = arith.addf %12, %14 : vector<32x128xf32>
    %cst_10 = arith.constant 0.00999999977 : f32
    %16 = vector.broadcast %cst_10 : f32 to vector<32x128xf32>
    %17 = arith.mulf %16, %15 : vector<32x128xf32>
    %18 = arith.maximumf %15, %17 : vector<32x128xf32>
    %c0_11 = arith.constant 0 : index
    %c0_12 = arith.constant 0 : index
    %19 = vector.load %arg6[%c0_11, %c0_12] : memref<1x32xf32, #tpu.memory_space<vmem>>, vector<1x32xf32>
    %cst_13 = arith.constant dense<0.000000e+00> : vector<1x128xf32>
    %20 = tpu.matmul %19, %18, %cst_13 {dimension_numbers = #tpu.dot_dimension_numbers<[1], [0], [0], [1], [0, 0, 1, 1], [], []>} : vector<1x32xf32>, vector<32x128xf32>, vector<1x128xf32> -> vector<1x128xf32>
    %c0_14 = arith.constant 0 : index
    %c0_15 = arith.constant 0 : index
    %21 = vector.load %arg7[%c0_14, %c0_15] : memref<1x1xf32, #tpu.memory_space<vmem>>, vector<1x1xf32>
    %22 = vector.broadcast %21 : vector<1x1xf32> to vector<1x128xf32>
    %23 = arith.addf %20, %22 : vector<1x128xf32>
    %cst_16 = arith.constant 1.000000e+00 : f32
    %24 = vector.broadcast %cst_16 : f32 to vector<1x128xf32>
    %25 = arith.mulf %24, %23 : vector<1x128xf32>
    %cst_17 = arith.constant 2.000000e+01 : f32
    %26 = vector.broadcast %cst_17 : f32 to vector<1x128xf32>
    %27 = arith.minimumf %25, %26 : vector<1x128xf32>
    %28 = math.exp %27 : vector<1x128xf32>
    %29 = math.log1p %28 : vector<1x128xf32>
    %cst_18 = arith.constant 1.000000e+00 : f32
    %30 = vector.broadcast %cst_18 : f32 to vector<1x128xf32>
    %31 = arith.divf %29, %30 : vector<1x128xf32>
    %cst_19 = arith.constant 2.000000e+01 : f32
    %32 = vector.broadcast %cst_19 : f32 to vector<1x128xf32>
    %33 = arith.cmpf ogt, %25, %32 : vector<1x128xf32>
    %34 = arith.select %33, %23, %31 : vector<1x128xi1>, vector<1x128xf32>
    %cst_20 = arith.constant 0.00999999977 : f32
    %cst_21 = arith.constant 1.000000e+00 : f32
    %35 = vector.broadcast %cst_20 : f32 to vector<1x128xf32>
    %36 = arith.maximumf %35, %34 : vector<1x128xf32>
    %37 = vector.broadcast %cst_21 : f32 to vector<1x128xf32>
    %38 = arith.minimumf %37, %36 : vector<1x128xf32>
    %c0_22 = arith.constant 0 : index
    %c0_23 = arith.constant 0 : index
    %39 = vector.load %arg8[%c0_22, %c0_23] : memref<1x128xf32, #tpu.memory_space<vmem>>, vector<1x128xf32>
    tpu.vector_store %arg8[%c0_22, %c0_23], %38 {strides = array<i32>} : memref<1x128xf32, #tpu.memory_space<vmem>>, vector<1x128xf32>,
    return
  }
  func.func @transform_0(%arg0: i32) -> (i32, i32) {
    %c0_i32 = arith.constant 0 : i32
    %c0_i32_0 = arith.constant 0 : i32
    return %c0_i32, %arg0 : i32, i32
  }
  func.func @transform_1(%arg0: i32) -> (i32, i32) {
    %c0_i32 = arith.constant 0 : i32
    %c0_i32_0 = arith.constant 0 : i32
    %c0_i32_1 = arith.constant 0 : i32
    return %c0_i32, %c0_i32_0 : i32, i32
  }
  func.func @transform_2(%arg0: i32) -> (i32, i32) {
    %c0_i32 = arith.constant 0 : i32
    %c0_i32_0 = arith.constant 0 : i32
    %c0_i32_1 = arith.constant 0 : i32
    return %c0_i32, %c0_i32_0 : i32, i32
  }
  func.func @transform_3(%arg0: i32) -> (i32, i32) {
    %c0_i32 = arith.constant 0 : i32
    %c0_i32_0 = arith.constant 0 : i32
    %c0_i32_1 = arith.constant 0 : i32
    return %c0_i32, %c0_i32_0 : i32, i32
  }
  func.func @transform_4(%arg0: i32) -> (i32, i32) {
    %c0_i32 = arith.constant 0 : i32
    %c0_i32_0 = arith.constant 0 : i32
    %c0_i32_1 = arith.constant 0 : i32
    return %c0_i32, %c0_i32_0 : i32, i32
  }
  func.func @transform_5(%arg0: i32) -> (i32, i32) {
    %c0_i32 = arith.constant 0 : i32
    %c0_i32_0 = arith.constant 0 : i32
    %c0_i32_1 = arith.constant 0 : i32
    return %c0_i32, %c0_i32_0 : i32, i32
  }
  func.func @transform_6(%arg0: i32) -> (i32, i32) {
    %c0_i32 = arith.constant 0 : i32
    %c0_i32_0 = arith.constant 0 : i32
    %c0_i32_1 = arith.constant 0 : i32
    return %c0_i32, %c0_i32_0 : i32, i32
  }
  func.func @transform_7(%arg0: i32) -> (i32, i32) {
    %c0_i32 = arith.constant 0 : i32
    %c0_i32_0 = arith.constant 0 : i32
    return %c0_i32, %arg0 : i32, i32
  }
}

</mosaic_0001>

<llo_original>
// kernel: _scoring_forward.1
$region0: #{_scoring_forward.1}
  #allocation0 [shape = 'u32[]', space=smem, size = 0x4, offset = 0x4, fixed_abs, tag = 'smem constant byte address 0x4 - core index']
  #allocation1 [shape = 'u32[144,128]{1,0:T(1,128)}', space=vmem, size = 0x12000, scoped, tag = 'internal scratch']
  #allocation2 [shape = 'f32[1,1]{1,0:T(1,128)S(1)}', space=vmem, size = 0x200, scoped, tag = 'scoped memory for _scoring_forward.1']
  %s0 = inlined_call_operand.vmem [shape: f32[1,128], index: 0, kind: input, shape index: {}]
  %s1 = inlined_call_operand.vmem [shape: f32[64,1], index: 1, kind: input, shape index: {}]
  %s2 = inlined_call_operand.vmem [shape: f32[64,1], index: 2, kind: input, shape index: {}]
  %s3 = inlined_call_operand.vmem [shape: f32[32,64], index: 3, kind: input, shape index: {}]
  %s4 = inlined_call_operand.vmem [shape: f32[32,1], index: 4, kind: input, shape index: {}]
  %s5 = inlined_call_operand.vmem [shape: f32[1,32], index: 5, kind: input, shape index: {}]
  %s6 = inlined_call_operand.<no memory space> [shape: f32[1,1], index: 6, kind: input, shape index: {}]
  %s7 = inlined_call_operand.vmem [shape: f32[1,128], index: 7, kind: output, shape index: {}]
  %s8 = sld [smem:[#allocation0]]
  $region38: #{_scoring_forward.1} parent=0
    _
  %s10 = ssub.s32 1, %s8
  %s11 = scalar_select 0, %s10, %s8
  %v12 = vstv %s6
  %13 = vst [vmem:[#allocation2] sm:$0x1] %v12
  // Predicated region
  $region2: #{_scoring_forward.1} parent=0 // pred_check
    _
  $region3: #{_scoring_forward.1} parent=0 // pred_check_branch
    %15 = sbr.rel (0) target = $region5
  $region4: #{_scoring_forward.1} parent=0 // pred_region
    _
  $region5: #{_scoring_forward.1} parent=0 // pred_fallthru
    _
  // Predicated region
  $region6: #{_scoring_forward.1} parent=0 // pred_check
    _
  $region7: #{_scoring_forward.1} parent=0 // pred_check_branch
    %17 = sbr.rel (0) target = $region9
  $region8: #{_scoring_forward.1} parent=0 // pred_region
    _
  $region9: #{_scoring_forward.1} parent=0 // pred_fallthru
    _
  // Predicated region
  $region10: #{_scoring_forward.1} parent=0 // pred_check
    _
  $region11: #{_scoring_forward.1} parent=0 // pred_check_branch
    %19 = sbr.rel (0) target = $region13
  $region12: #{_scoring_forward.1} parent=0 // pred_region
    _
  $region13: #{_scoring_forward.1} parent=0 // pred_fallthru
    _
  // Predicated region
  $region14: #{_scoring_forward.1} parent=0 // pred_check
    _
  $region15: #{_scoring_forward.1} parent=0 // pred_check_branch
    %21 = sbr.rel (0) target = $region17
  $region16: #{_scoring_forward.1} parent=0 // pred_region
    _
  $region17: #{_scoring_forward.1} parent=0 // pred_fallthru
    _
  // Predicated region
  $region18: #{_scoring_forward.1} parent=0 // pred_check
    _
  $region19: #{_scoring_forward.1} parent=0 // pred_check_branch
    %23 = sbr.rel (0) target = $region21
  $region20: #{_scoring_forward.1} parent=0 // pred_region
    _
  $region21: #{_scoring_forward.1} parent=0 // pred_fallthru
    _
  // Predicated region
  $region22: #{_scoring_forward.1} parent=0 // pred_check
    _
  $region23: #{_scoring_forward.1} parent=0 // pred_check_branch
    %25 = sbr.rel (0) target = $region25
  $region24: #{_scoring_forward.1} parent=0 // pred_region
    _
  $region25: #{_scoring_forward.1} parent=0 // pred_fallthru
    _
  // Predicated region
  $region26: #{_scoring_forward.1} parent=0 // pred_check
    _
  $region27: #{_scoring_forward.1} parent=0 // pred_check_branch
    %27 = sbr.rel (0) target = $region29
  $region28: #{_scoring_forward.1} parent=0 // pred_region
    _
  $region29: #{_scoring_forward.1} parent=0 // pred_fallthru
    _
  %v28 = vld [vmem:[%s0] sm:$0x1]
  %v29 = vld [vmem:[%s1] sm:$0xff]
  %v30 = vld [vmem:[%s1 + $0x8] sm:$0xff]
  %v31 = vld [vmem:[%s1 + $0x10] sm:$0xff]
  %v32 = vld [vmem:[%s1 + $0x18] sm:$0xff]
  %v33 = vld [vmem:[%s1 + $0x20] sm:$0xff]
  %v34 = vld [vmem:[%s1 + $0x28] sm:$0xff]
  %v35 = vld [vmem:[%s1 + $0x30] sm:$0xff]
  %v36 = vld [vmem:[%s1 + $0x38] sm:$0xff]
  %38 = vset.pattern.permute.xlu0 0
  %39 = vperm.xlu0 %38, %v29
  %v40 = vpop.permute.xlu0 %39
  %43 = vset.pattern.permute.xlu0 0
  %44 = vperm.xlu0 %43, %v30
  %v45 = vpop.permute.xlu0 %44
  %48 = vset.pattern.permute.xlu0 0
  %49 = vperm.xlu0 %48, %v31
  %v50 = vpop.permute.xlu0 %49
  %53 = vset.pattern.permute.xlu0 0
  %54 = vperm.xlu0 %53, %v32
  %v55 = vpop.permute.xlu0 %54
  %58 = vset.pattern.permute.xlu0 0
  %59 = vperm.xlu0 %58, %v33
  %v60 = vpop.permute.xlu0 %59
  %63 = vset.pattern.permute.xlu0 0
  %64 = vperm.xlu0 %63, %v34
  %v65 = vpop.permute.xlu0 %64
  %68 = vset.pattern.permute.xlu0 0
  %69 = vperm.xlu0 %68, %v35
  %v70 = vpop.permute.xlu0 %69
  %73 = vset.pattern.permute.xlu0 0
  %74 = vperm.xlu0 %73, %v36
  %v75 = vpop.permute.xlu0 %74
  %v78 = vlaneseq
  %v79 = vshrl.u32 %v78, 7
  %v80 = vsub.s32 0, %v79
  %v81 = vrot.slane %v28, %v80
  %v83 = vmul.f32 %v40, %v81
  %v84 = vmul.f32 %v45, %v81
  %v85 = vmul.f32 %v50, %v81
  %v86 = vmul.f32 %v55, %v81
  %v87 = vmul.f32 %v60, %v81
  %v88 = vmul.f32 %v65, %v81
  %v89 = vmul.f32 %v70, %v81
  %v90 = vmul.f32 %v75, %v81
  %v91 = vld [vmem:[%s2] sm:$0xff]
  %v92 = vld [vmem:[%s2 + $0x8] sm:$0xff]
  %v93 = vld [vmem:[%s2 + $0x10] sm:$0xff]
  %v94 = vld [vmem:[%s2 + $0x18] sm:$0xff]
  %v95 = vld [vmem:[%s2 + $0x20] sm:$0xff]
  %v96 = vld [vmem:[%s2 + $0x28] sm:$0xff]
  %v97 = vld [vmem:[%s2 + $0x30] sm:$0xff]
  %v98 = vld [vmem:[%s2 + $0x38] sm:$0xff]
  %100 = vset.pattern.permute.xlu0 0
  %101 = vperm.xlu0 %100, %v91
  %v102 = vpop.permute.xlu0 %101
  %105 = vset.pattern.permute.xlu0 0
  %106 = vperm.xlu0 %105, %v92
  %v107 = vpop.permute.xlu0 %106
  %110 = vset.pattern.permute.xlu0 0
  %111 = vperm.xlu0 %110, %v93
  %v112 = vpop.permute.xlu0 %111
  %115 = vset.pattern.permute.xlu0 0
  %116 = vperm.xlu0 %115, %v94
  %v117 = vpop.permute.xlu0 %116
  %120 = vset.pattern.permute.xlu0 0
  %121 = vperm.xlu0 %120, %v95
  %v122 = vpop.permute.xlu0 %121
  %125 = vset.pattern.permute.xlu0 0
  %126 = vperm.xlu0 %125, %v96
  %v127 = vpop.permute.xlu0 %126
  %130 = vset.pattern.permute.xlu0 0
  %131 = vperm.xlu0 %130, %v97
  %v132 = vpop.permute.xlu0 %131
  %135 = vset.pattern.permute.xlu0 0
  %136 = vperm.xlu0 %135, %v98
  %v137 = vpop.permute.xlu0 %136
  %v139 = vadd.f32 %v83, %v102
  %v140 = vadd.f32 %v84, %v107
  %v141 = vadd.f32 %v85, %v112
  %v142 = vadd.f32 %v86, %v117
  %v143 = vadd.f32 %v87, %v122
  %v144 = vadd.f32 %v88, %v127
  %v145 = vadd.f32 %v89, %v132
  %v146 = vadd.f32 %v90, %v137
  %v147 = vmul.f32 %v139, 0.01
  %v148 = vmul.f32 %v140, 0.01
  %v149 = vmul.f32 %v141, 0.01
  %v150 = vmul.f32 %v142, 0.01
  %v151 = vmul.f32 %v143, 0.01
  %v152 = vmul.f32 %v144, 0.01
  %v153 = vmul.f32 %v145, 0.01
  %v154 = vmul.f32 %v146, 0.01
  %v155 = vmax.f32 %v139, %v147
  %v156 = vmax.f32 %v140, %v148
  %v157 = vmax.f32 %v141, %v149
  %v158 = vmax.f32 %v142, %v150
  %v159 = vmax.f32 %v143, %v151
  %v160 = vmax.f32 %v144, %v152
  %v161 = vmax.f32 %v145, %v153
  %v162 = vmax.f32 %v146, %v154
  %v163 = vld [vmem:[%s3] sm:$0xff]
  %v164 = vld [vmem:[%s3 + $0x8] sm:$0xff]
  %v165 = vld [vmem:[%s3 + $0x10] sm:$0xff]
  %v166 = vld [vmem:[%s3 + $0x18] sm:$0xff]
  %v167 = vld [vmem:[%s4] sm:$0xff]
  %v168 = vld [vmem:[%s4 + $0x8] sm:$0xff]
  %v169 = vld [vmem:[%s4 + $0x10] sm:$0xff]
  %v170 = vld [vmem:[%s4 + $0x18] sm:$0xff]
  %172 = vset.pattern.permute.xlu0 0
  %173 = vperm.xlu0 %172, %v167
  %v174 = vpop.permute.xlu0 %173
  %177 = vset.pattern.permute.xlu0 0
  %178 = vperm.xlu0 %177, %v168
  %v179 = vpop.permute.xlu0 %178
  %182 = vset.pattern.permute.xlu0 0
  %183 = vperm.xlu0 %182, %v169
  %v184 = vpop.permute.xlu0 %183
  %187 = vset.pattern.permute.xlu0 0
  %188 = vperm.xlu0 %187, %v170
  %v189 = vpop.permute.xlu0 %188
  %vm191 = vcmask 523264
  %v193 = vsel %vm191, %v163, 0
  %v196 = vsel %vm191, %v164, 0
  %v199 = vsel %vm191, %v165, 0
  %v202 = vsel %vm191, %v166, 0
  %204 = vmatprep.subr.mxu0 0.0
  %205 = vmatpush1.msra.mxu0 0.0
  %206 = vmatprep.subr.mxu0 0.0
  %207 = vmatpush1.msra.mxu0 0.0
  %208 = vmatprep.subr.mxu0 0.0
  %209 = vmatpush1.msra.mxu0 0.0
  %210 = vmatprep.subr.mxu0 0.0
  %211 = vmatpush1.msra.mxu0 0.0
  %212 = vmatprep.subr.mxu0 0.0
  %213 = vmatpush1.msra.mxu0 0.0
  %214 = vmatprep.subr.mxu0 0.0
  %215 = vmatpush1.msra.mxu0 0.0
  %216 = vmatprep.subr.mxu0 0.0
  %217 = vmatpush1.msra.mxu0 0.0
  %218 = vmatprep.subr.mxu0 0.0
  %219 = vmatpush1.msra.mxu0 0.0
  %220 = vmatprep.subr.mxu0 0.0
  %221 = vmatpush1.msra.mxu0 %v162
  %222 = vmatprep.subr.mxu0 0.0
  %223 = vmatpush1.msra.mxu0 %v161
  %224 = vmatprep.subr.mxu0 0.0
  %225 = vmatpush1.msra.mxu0 %v160
  %226 = vmatprep.subr.mxu0 0.0
  %227 = vmatpush1.msra.mxu0 %v159
  %228 = vmatprep.subr.mxu0 0.0
  %229 = vmatpush1.msra.mxu0 %v158
  %230 = vmatprep.subr.mxu0 0.0
  %231 = vmatpush1.msra.mxu0 %v157
  %232 = vmatprep.subr.mxu0 0.0
  %233 = vmatpush1.msra.mxu0 %v156
  %234 = vmatprep.subr.mxu0 0.0
  %235 = vmatpush1.msra.mxu0 %v155
  %236 = vmatprep.subr.mxu0 0.0
  %237 = vmatpush2.msra.mxu0 0.0
  %238 = vmatprep.subr.mxu0 0.0
  %239 = vmatpush2.msra.mxu0 0.0
  %240 = vmatprep.subr.mxu0 0.0
  %241 = vmatpush2.msra.mxu0 0.0
  %242 = vmatprep.subr.mxu0 0.0
  %243 = vmatpush2.msra.mxu0 0.0
  %244 = vmatprep.subr.mxu0 0.0
  %245 = vmatpush2.msra.mxu0 0.0
  %246 = vmatprep.subr.mxu0 0.0
  %247 = vmatpush2.msra.mxu0 0.0
  %248 = vmatprep.subr.mxu0 0.0
  %249 = vmatpush2.msra.mxu0 0.0
  %250 = vmatprep.subr.mxu0 0.0
  %251 = vmatpush2.msra.mxu0 0.0
  %252 = vmatprep.subr.mxu0 0.0
  %253 = vmatpush2.msra.mxu0 0.0
  %254 = vmatprep.subr.mxu0 0.0
  %255 = vmatpush2.msra.mxu0 0.0
  %256 = vmatprep.subr.mxu0 0.0
  %257 = vmatpush2.msra.mxu0 0.0
  %258 = vmatprep.subr.mxu0 0.0
  %259 = vmatpush2.msra.mxu0 0.0
  %260 = vmatprep.subr.mxu0 0.0
  %261 = vmatpush2.msra.mxu0 0.0
  %262 = vmatprep.subr.mxu0 0.0
  %263 = vmatpush2.msra.mxu0 0.0
  %264 = vmatprep.subr.mxu0 0.0
  %265 = vmatpush2.msra.mxu0 0.0
  %266 = vmatprep.subr.mxu0 0.0
  %267 = vmatpush2.msra.mxu0 0.0
  %268 = vmatprep.mubr.f32.mxu0 0.0
  %269 = vmatmul.mubr.f32.gmra.mxu0 %v193
  %v270 = vpop.f32.mrf.mxu0
  %v271 = vadd.f32 %v174, %v270
  %v272 = vpop.f32.mrf.mxu0
  %273 = vmatprep.mubr.f32.mxu0 0.0
  %274 = vmatmul.mubr.f32.gmra.mxu0 %v196
  %v275 = vpop.f32.mrf.mxu0
  %v276 = vadd.f32 %v179, %v275
  %v277 = vpop.f32.mrf.mxu0
  %278 = vmatprep.mubr.f32.mxu0 0.0
  %279 = vmatmul.mubr.f32.gmra.mxu0 %v199
  %v280 = vpop.f32.mrf.mxu0
  %v281 = vadd.f32 %v184, %v280
  %v282 = vpop.f32.mrf.mxu0
  %283 = vmatprep.mubr.f32.mxu0 0.0
  %284 = vmatmul.mubr.f32.gmra.mxu0 %v202
  %v285 = vpop.f32.mrf.mxu0
  %v286 = vadd.f32 %v189, %v285
  %v287 = vpop.f32.mrf.mxu0
  %288 = vdwg.mxu0
  %v289 = vmul.f32 %v271, 0.01
  %v290 = vmul.f32 %v276, 0.01
  %v291 = vmul.f32 %v281, 0.01
  %v292 = vmul.f32 %v286, 0.01
  %v293 = vmax.f32 %v271, %v289
  %v294 = vmax.f32 %v276, %v290
  %v295 = vmax.f32 %v281, %v291
  %v296 = vmax.f32 %v286, %v292
  %v297 = vld [vmem:[%s5] sm:$0x1]
  %v298 = vld [vmem:[#allocation2] sm:$0x1]
  %300 = vset.pattern.permute.xlu0 0
  %301 = vperm.xlu0 %300, %v298
  %v302 = vpop.permute.xlu0 %301
  %v304 = vlaneseq
  %v305 = vshrl.u32 %v304, 7
  %v306 = vsub.s32 0, %v305
  %v307 = vrot.slane %v302, %v306
  %vm308 = vcmask 261120
  %v310 = vsel %vm308, %v297, 0
  %312 = vmatprep.subr.mxu0 0.0
  %313 = vmatpush1.msra.mxu0 0.0
  %314 = vmatprep.subr.mxu0 0.0
  %315 = vmatpush1.msra.mxu0 0.0
  %316 = vmatprep.subr.mxu0 0.0
  %317 = vmatpush1.msra.mxu0 0.0
  %318 = vmatprep.subr.mxu0 0.0
  %319 = vmatpush1.msra.mxu0 0.0
  %320 = vmatprep.subr.mxu0 0.0
  %321 = vmatpush1.msra.mxu0 0.0
  %322 = vmatprep.subr.mxu0 0.0
  %323 = vmatpush1.msra.mxu0 0.0
  %324 = vmatprep.subr.mxu0 0.0
  %325 = vmatpush1.msra.mxu0 0.0
  %326 = vmatprep.subr.mxu0 0.0
  %327 = vmatpush1.msra.mxu0 0.0
  %328 = vmatprep.subr.mxu0 0.0
  %329 = vmatpush1.msra.mxu0 0.0
  %330 = vmatprep.subr.mxu0 0.0
  %331 = vmatpush1.msra.mxu0 0.0
  %332 = vmatprep.subr.mxu0 0.0
  %333 = vmatpush1.msra.mxu0 0.0
  %334 = vmatprep.subr.mxu0 0.0
  %335 = vmatpush1.msra.mxu0 0.0
  %336 = vmatprep.subr.mxu0 0.0
  %337 = vmatpush1.msra.mxu0 %v296
  %338 = vmatprep.subr.mxu0 0.0
  %339 = vmatpush1.msra.mxu0 %v295
  %340 = vmatprep.subr.mxu0 0.0
  %341 = vmatpush1.msra.mxu0 %v294
  %342 = vmatprep.subr.mxu0 0.0
  %343 = vmatpush1.msra.mxu0 %v293
  %344 = vmatprep.subr.mxu0 0.0
  %345 = vmatpush2.msra.mxu0 0.0
  %346 = vmatprep.subr.mxu0 0.0
  %347 = vmatpush2.msra.mxu0 0.0
  %348 = vmatprep.subr.mxu0 0.0
  %349 = vmatpush2.msra.mxu0 0.0
  %350 = vmatprep.subr.mxu0 0.0
  %351 = vmatpush2.msra.mxu0 0.0
  %352 = vmatprep.subr.mxu0 0.0
  %353 = vmatpush2.msra.mxu0 0.0
  %354 = vmatprep.subr.mxu0 0.0
  %355 = vmatpush2.msra.mxu0 0.0
  %356 = vmatprep.subr.mxu0 0.0
  %357 = vmatpush2.msra.mxu0 0.0
  %358 = vmatprep.subr.mxu0 0.0
  %359 = vmatpush2.msra.mxu0 0.0
  %360 = vmatprep.subr.mxu0 0.0
  %361 = vmatpush2.msra.mxu0 0.0
  %362 = vmatprep.subr.mxu0 0.0
  %363 = vmatpush2.msra.mxu0 0.0
  %364 = vmatprep.subr.mxu0 0.0
  %365 = vmatpush2.msra.mxu0 0.0
  %366 = vmatprep.subr.mxu0 0.0
  %367 = vmatpush2.msra.mxu0 0.0
  %368 = vmatprep.subr.mxu0 0.0
  %369 = vmatpush2.msra.mxu0 0.0
  %370 = vmatprep.subr.mxu0 0.0
  %371 = vmatpush2.msra.mxu0 0.0
  %372 = vmatprep.subr.mxu0 0.0
  %373 = vmatpush2.msra.mxu0 0.0
  %374 = vmatprep.subr.mxu0 0.0
  %375 = vmatpush2.msra.mxu0 0.0
  %376 = vmatprep.mubr.f32.mxu0 0.0
  %377 = vmatmul.mubr.f32.gmra.mxu0 %v310
  %v378 = vpop.f32.mrf.mxu0
  %v379 = vadd.f32 %v307, %v378
  %v380 = vpop.f32.mrf.mxu0
  %381 = vdwg.mxu0
  %v382 = vmin.f32 %v379, 20.0
  %v383 = vmul.f32 %v382, 1.442695
  %v384 = vpow.pop %v383
  %v385 = vadd.f32 %v384, 1.0
  %v386 = vlog2.pop %v385
  %v387 = vmul.f32 %v386, 0.6931472
  %v388 = vmul.f32 -0.5, %v384
  %v389 = vadd.f32 %v388, 1.0
  %v390 = vmul.f32 %v389, %v384
  %v391 = vand.u32 2147483647, %v384
  %vm392 = vcmp.lt.f32.partialorder %v391, 0.0004427343
  %v393 = vsel %vm392, %v390, %v387
  %vm394 = vcmp.gt.f32.partialorder %v379, 20.0
  %v395 = vsel %vm394, %v379, %v393
  %v396 = vmax.f32 %v395, 0.01
  %v397 = vmin.f32 %v396, 1.0
  %398 = vst [vmem:[%s7] sm:$0x1] %v397
  // Predicated region
  $region30: #{_scoring_forward.1} parent=0 // pred_check
    _
  $region31: #{_scoring_forward.1} parent=0 // pred_check_branch
    %400 = sbr.rel (0) target = $region33
  $region32: #{_scoring_forward.1} parent=0 // pred_region
    _
  $region33: #{_scoring_forward.1} parent=0 // pred_fallthru
    _
  // Predicated region
  $region34: #{_scoring_forward.1} parent=0 // pred_check
    _
  $region35: #{_scoring_forward.1} parent=0 // pred_check_branch
    %402 = sbr.rel (0) target = $region37
  $region36: #{_scoring_forward.1} parent=0 // pred_region
    _
  $region37: #{_scoring_forward.1} parent=0 // pred_fallthru
    _

</llo_original>
